<compile_context>
chip_gen: v7x
topology: tpu7x:2x2x1
jax: 0.10.0
libtpu: 0.0.40
codegen_flags: <defaults>
</compile_context>

<pallas_src>
import functools

import jax
import jax.numpy as jnp
from jax.experimental import pallas as pl
from jax.experimental.pallas import tpu as pltpu


BN_EPS = 1e-5
NORM_EPS = 1e-12

# Largest folded weight (F x E in x.dtype) kept fully resident in VMEM before
# switching to contraction-axis (F) tiling.  Sized so a single-buffered weight
# plus x / out / accumulator tiles fit comfortably under v7x's 32 MiB scoped
# default (64 MiB physical).
_WEIGHT_RESIDENT_BYTES = 8 * 1024 * 1024


def _round_up(n, m):
    return ((n + m - 1) // m) * m


def embed_branch_kernel(x_ref, w_ref, b_ref, o_ref, acc_ref):
    k = pl.program_id(1)

    @pl.when(k == 0)
    def _():
        acc_ref[...] = jnp.zeros_like(acc_ref)

    # Linear (eval-mode BatchNorm pre-folded into w/b): partial contraction
    # over this F tile; MXU accumulates in f32.
    acc_ref[...] += jnp.dot(x_ref[...], w_ref[...],
                            preferred_element_type=jnp.float32)

    @pl.when(k == pl.num_programs(1) - 1)
    def _():
        y = acc_ref[...] + b_ref[...]

        # ReLU
        y = jnp.maximum(y, 0.0)

        # Dropout(p=0.5): identity in eval mode.

        # F.normalize: per-row L2 normalize, y / max(||y||, 1e-12).
        # rsqrt(max(sumsq, eps^2)) == 1 / max(||y||, eps); rsqrt lands on the
        # EUP slot and the multiply replaces a per-element divide.
        sumsq = jnp.sum(y * y, axis=-1, keepdims=True)
        inv_norm = jax.lax.rsqrt(jnp.maximum(sumsq, NORM_EPS * NORM_EPS))
        o_ref[...] = (y * inv_norm).astype(o_ref.dtype)


@functools.partial(jax.jit, static_argnames=("tile_b", "tile_f"))
def embed_branch(x, w_t, b, gamma, beta, running_mean, running_var, *,
                 tile_b=None, tile_f=None):
    """x: (B, F); w_t: (F, E) (pre-transposed nn.Linear weight); params: (E,)."""
    B, F = x.shape
    E = w_t.shape[1]
    out_dtype = x.dtype
    in_itemsize = jnp.dtype(x.dtype).itemsize
    out_itemsize = jnp.dtype(out_dtype).itemsize

    # --- Fold eval-mode BatchNorm into the linear layer (outside the kernel).
    scale = gamma * jax.lax.rsqrt(running_var + BN_EPS)          # (E,)
    w_fold = (w_t * scale[None, :]).astype(x.dtype)              # (F, E)
    b_fold = ((b - running_mean) * scale + beta).astype(jnp.float32)
    b_row = b_fold.reshape(1, E)                                 # (1, E)

    # --- Batch tiling: big tiles amortize the ~0.35us/step overhead; keep the
    # "parallel" batch axis at grid >= 2 so both v7x TensorCores get work.
    # No jnp.pad: Pallas handles the ragged last block; rows are independent.
    if tile_b is None:
        tile_b = min(512, _round_up(pl.cdiv(B, 2), 8))
    n_tiles_b = pl.cdiv(B, tile_b)

    # --- Contraction (F) tiling so the resident weight tile fits VMEM.  Small
    # F stays a single k step (no extra traffic).  E is never tiled (the L2
    # norm reduces over the full E row).
    if tile_f is None:
        if F * E * in_itemsize <= _WEIGHT_RESIDENT_BYTES:
            tile_f = F
        else:
            tile_f = max(
                128,
                (_WEIGHT_RESIDENT_BYTES // (E * in_itemsize)) // 128 * 128)
    n_tiles_f = pl.cdiv(F, tile_f)
    if n_tiles_f > 1 and F % tile_f != 0:
        # Zero-pad the contraction axis only (adds exact zeros to the sum).
        f_pad = n_tiles_f * tile_f
        x = jnp.pad(x, ((0, 0), (0, f_pad - F)))
        w_fold = jnp.pad(w_fold, ((0, f_pad - F), (0, 0)))

    # --- Single-buffer blocks whose index_map is constant (pure VMEM waste
    # to double-buffer them).
    if n_tiles_f == 1:
        w_spec = pl.BlockSpec((tile_f, E), lambda i, k: (k, 0),
                              pipeline_mode=pl.Buffered(1))
        w_bufs = 1
    else:
        w_spec = pl.BlockSpec((tile_f, E), lambda i, k: (k, 0))
        w_bufs = 2
    b_spec = pl.BlockSpec((1, E), lambda i, k: (0, 0),
                          pipeline_mode=pl.Buffered(1))

    # --- Scoped-VMEM limit sized to the actual buffers (+50% headroom).
    vmem_bytes = (2 * tile_b * tile_f * in_itemsize      # x (double-buffered)
                  + w_bufs * tile_f * E * in_itemsize    # folded weight
                  + E * 4                                # folded bias
                  + 2 * tile_b * E * out_itemsize        # out (double-buffered)
                  + tile_b * E * 4)                      # f32 accumulator
    vmem_limit = min(max(int(vmem_bytes * 1.5) + (2 << 20), 32 << 20), 64 << 20)

    cost = pl.CostEstimate(
        flops=2 * B * F * E,
        bytes_accessed=(B * F * in_itemsize + F * E * in_itemsize + E * 4
                        + B * E * out_itemsize),
        transcendentals=B,   # one rsqrt per row
    )

    out = pl.pallas_call(
        embed_branch_kernel,
        out_shape=jax.ShapeDtypeStruct((B, E), out_dtype),
        grid_spec=pltpu.PrefetchScalarGridSpec(
            num_scalar_prefetch=0,
            grid=(n_tiles_b, n_tiles_f),
            in_specs=[
                pl.BlockSpec((tile_b, tile_f), lambda i, k: (i, k)),  # x tile
                w_spec,                                               # weight
                b_spec,                                               # bias
            ],
            out_specs=pl.BlockSpec((tile_b, E), lambda i, k: (i, 0)),
            scratch_shapes=[pltpu.VMEM((tile_b, E), jnp.float32)],
        ),
        compiler_params=pltpu.CompilerParams(
            dimension_semantics=("parallel", "arbitrary"),
            vmem_limit_bytes=vmem_limit),
        cost_estimate=cost,
    )(x, w_fold, b_row)

    return out


def embed_branch_ref(x, w_t, b, gamma, beta, running_mean, running_var):
    """Pure-JAX reference of the un-folded eval-mode forward."""
    y = x @ w_t + b
    y = (y - running_mean) * jax.lax.rsqrt(running_var + BN_EPS) * gamma + beta
    y = jnp.maximum(y, 0.0)
    n = jnp.sqrt(jnp.sum(y * y, axis=-1, keepdims=True))
    return y / jnp.maximum(n, NORM_EPS)


if __name__ == "__main__":
    key = jax.random.PRNGKey(0)
    B, FEAT_DIM, EMBED_DIM = 200, 32, 128   # ragged B exercises edge handling

    k_x, k_w, k_b, k_m, k_v = jax.random.split(key, 5)

    x = jax.random.normal(k_x, (B, FEAT_DIM), dtype=jnp.float32)

    # Deterministic synthetic parameters (not a checkpoint).
    # nn.Linear weight is (E, F); pre-transpose to (F, E) for the kernel.
    w = jax.random.normal(k_w, (EMBED_DIM, FEAT_DIM), dtype=jnp.float32) * 0.05
    w_t = w.T
    b = jax.random.normal(k_b, (EMBED_DIM,), dtype=jnp.float32) * 0.01

    gamma = 1.0 + 0.01 * jnp.arange(EMBED_DIM, dtype=jnp.float32)
    beta = 0.02 * jnp.arange(EMBED_DIM, dtype=jnp.float32) - 0.5
    running_mean = 0.1 * jax.random.normal(k_m, (EMBED_DIM,), dtype=jnp.float32)
    running_var = 1.0 + 0.1 * jax.random.uniform(k_v, (EMBED_DIM,),
                                                 dtype=jnp.float32)

    out = embed_branch(x, w_t, b, gamma, beta, running_mean, running_var)
    out = jax.block_until_ready(out)

    ref = embed_branch_ref(x, w_t, b, gamma, beta, running_mean, running_var)
    assert out.shape == (B, EMBED_DIM)
    assert jnp.allclose(out, ref, atol=1e-5, rtol=1e-5), "mismatch vs reference"

    print("KERNEL_OK")
</pallas_src>

<mosaic_0001>
module attributes {stable_mosaic.version = 11 : i64} {
  func.func @embed_branch_kernel(%arg0: i32, %arg1: i32, %arg2: memref<104x32xf32, #tpu.memory_space<vmem>>, %arg3: memref<32x128xf32, #tpu.memory_space<vmem>>, %arg4: memref<1x128xf32, #tpu.memory_space<vmem>>, %arg5: memref<104x128xf32, #tpu.memory_space<vmem>>, %arg6: memref<104x128xf32, #tpu.memory_space<vmem>>) attributes {dimension_semantics = [#tpu.dimension_semantics<parallel>, #tpu.dimension_semantics<arbitrary>], iteration_bounds = array<i64: 2, 1>, scalar_prefetch = 0 : i64, scratch_operands = 1 : i64, tpu.core_type = #tpu.core_type<tc>, window_params = [{transform_indices = @transform_0, window_bounds = array<i64: 104, 32>}, {pipeline_mode = #tpu.pipeline_mode<synchronous>, transform_indices = @transform_1, window_bounds = array<i64: 32, 128>}, {pipeline_mode = #tpu.pipeline_mode<synchronous>, transform_indices = @transform_2, window_bounds = array<i64: 1, 128>}, {transform_indices = @transform_3, window_bounds = array<i64: 104, 128>}]} {
    %c0_i32 = arith.constant 0 : i32
    %0 = arith.cmpi eq, %arg1, %c0_i32 : i32
    %1 = arith.extui %0 : i1 to i32
    %c0_i32_0 = arith.constant 0 : i32
    %2 = arith.cmpi ne, %1, %c0_i32_0 : i32
    scf.if %2 {
      %cst_10 = arith.constant 0.000000e+00 : f32
      %12 = vector.broadcast %cst_10 : f32 to vector<104x128xf32>
      %c0_11 = arith.constant 0 : index
      %c0_12 = arith.constant 0 : index
      %13 = vector.load %arg6[%c0_11, %c0_12] : memref<104x128xf32, #tpu.memory_space<vmem>>, vector<104x128xf32>
      tpu.vector_store %arg6[%c0_11, %c0_12], %12 {strides = array<i32>} : memref<104x128xf32, #tpu.memory_space<vmem>>, vector<104x128xf32>,
    } else {
    }
    %c0 = arith.constant 0 : index
    %c0_1 = arith.constant 0 : index
    %3 = vector.load %arg6[%c0, %c0_1] : memref<104x128xf32, #tpu.memory_space<vmem>>, vector<104x128xf32>
    %c0_2 = arith.constant 0 : index
    %c0_3 = arith.constant 0 : index
    %4 = vector.load %arg2[%c0_2, %c0_3] : memref<104x32xf32, #tpu.memory_space<vmem>>, vector<104x32xf32>
    %c0_4 = arith.constant 0 : index
    %c0_5 = arith.constant 0 : index
    %5 = vector.load %arg3[%c0_4, %c0_5] : memref<32x128xf32, #tpu.memory_space<vmem>>, vector<32x128xf32>
    %cst = arith.constant dense<0.000000e+00> : vector<104x128xf32>
    %6 = tpu.matmul %4, %5, %cst {dimension_numbers = #tpu.dot_dimension_numbers<[1], [0], [0], [1], [0, 0, 1, 1], [], []>} : vector<104x32xf32>, vector<32x128xf32>, vector<104x128xf32> -> vector<104x128xf32>
    %7 = arith.addf %3, %6 : vector<104x128xf32>
    %c0_6 = arith.constant 0 : index
    %c0_7 = arith.constant 0 : index
    %8 = vector.load %arg6[%c0_6, %c0_7] : memref<104x128xf32, #tpu.memory_space<vmem>>, vector<104x128xf32>
    tpu.vector_store %arg6[%c0_6, %c0_7], %7 {strides = array<i32>} : memref<104x128xf32, #tpu.memory_space<vmem>>, vector<104x128xf32>,
    %c0_i32_8 = arith.constant 0 : i32
    %9 = arith.cmpi eq, %arg1, %c0_i32_8 : i32
    %10 = arith.extui %9 : i1 to i32
    %c0_i32_9 = arith.constant 0 : i32
    %11 = arith.cmpi ne, %10, %c0_i32_9 : i32
    scf.if %11 {
      %c0_10 = arith.constant 0 : index
      %c0_11 = arith.constant 0 : index
      %12 = vector.load %arg6[%c0_10, %c0_11] : memref<104x128xf32, #tpu.memory_space<vmem>>, vector<104x128xf32>
      %c0_12 = arith.constant 0 : index
      %c0_13 = arith.constant 0 : index
      %13 = vector.load %arg4[%c0_12, %c0_13] : memref<1x128xf32, #tpu.memory_space<vmem>>, vector<1x128xf32>
      %14 = vector.broadcast %13 : vector<1x128xf32> to vector<104x128xf32>
      %15 = arith.addf %12, %14 : vector<104x128xf32>
      %cst_14 = arith.constant 0.000000e+00 : f32
      %16 = vector.broadcast %cst_14 : f32 to vector<104x128xf32>
      %17 = arith.maximumf %15, %16 : vector<104x128xf32>
      %18 = arith.mulf %17, %17 : vector<104x128xf32>
      %cst_15 = arith.constant dense<0.000000e+00> : vector<104xf32>
      %19 = vector.multi_reduction <add>, %18, %cst_15 [1] : vector<104x128xf32> to vector<104xf32>
      %20 = vector.shape_cast %19 : vector<104xf32> to vector<104x1xf32>
      %cst_16 = arith.constant 1.000000e-24 : f32
      %21 = vector.broadcast %cst_16 : f32 to vector<104x1xf32>
      %22 = arith.maximumf %20, %21 : vector<104x1xf32>
      %23 = math.rsqrt %22 : vector<104x1xf32>
      %24 = vector.broadcast %23 : vector<104x1xf32> to vector<104x128xf32>
      %25 = arith.mulf %17, %24 : vector<104x128xf32>
      %c0_17 = arith.constant 0 : index
      %c0_18 = arith.constant 0 : index
      %26 = vector.load %arg5[%c0_17, %c0_18] : memref<104x128xf32, #tpu.memory_space<vmem>>, vector<104x128xf32>
      tpu.vector_store %arg5[%c0_17, %c0_18], %25 {strides = array<i32>} : memref<104x128xf32, #tpu.memory_space<vmem>>, vector<104x128xf32>,
    } else {
    }
    return
  }
  func.func @transform_0(%arg0: i32, %arg1: i32) -> (i32, i32) {
    %c0_i32 = arith.constant 0 : i32
    return %arg0, %arg1 : i32, i32
  }
  func.func @transform_1(%arg0: i32, %arg1: i32) -> (i32, i32) {
    %c0_i32 = arith.constant 0 : i32
    %c0_i32_0 = arith.constant 0 : i32
    return %arg1, %c0_i32 : i32, i32
  }
  func.func @transform_2(%arg0: i32, %arg1: i32) -> (i32, i32) {
    %c0_i32 = arith.constant 0 : i32
    %c0_i32_0 = arith.constant 0 : i32
    %c0_i32_1 = arith.constant 0 : i32
    return %c0_i32, %c0_i32_0 : i32, i32
  }
  func.func @transform_3(%arg0: i32, %arg1: i32) -> (i32, i32) {
    %c0_i32 = arith.constant 0 : i32
    %c0_i32_0 = arith.constant 0 : i32
    return %arg0, %c0_i32 : i32, i32
  }
}

</mosaic_0001>

<llo_original>
// kernel: embed_branch.1
$region0: #{embed_branch.1}
  #allocation0 [shape = 'u32[]', space=smem, size = 0x4, offset = 0x4, fixed_abs, tag = 'smem constant byte address 0x4 - core index']
  #allocation1 [shape = 'u32[144,128]{1,0:T(1,128)}', space=vmem, size = 0x12000, scoped, tag = 'internal scratch']
  #allocation2 [shape = 'f32[104,128]{1,0:T(8,128)}', space=vmem, size = 0xd000, scoped, tag = 'scratch operand']
  %s0 = inlined_call_operand.vmem [shape: f32[200,32], index: 0, kind: input, shape index: {}]
  %s1 = inlined_call_operand.vmem [shape: f32[32,128], index: 1, kind: input, shape index: {}]
  %s2 = inlined_call_operand.vmem [shape: f32[1,128], index: 2, kind: input, shape index: {}]
  %s3 = inlined_call_operand.hbm [shape: f32[200,128], index: 3, kind: output, shape index: {}]
  %s4 = sld [smem:[#allocation0]]
  $region53: #{embed_branch.1} parent=0
    _
  %s6 = ssub.s32 1, %s4
  %s7 = scalar_select 0, %s6, %s4
  $region1: #{embed_branch.1} parent=0
    #allocation3 [shape = 'u8[106496]{0}', space=vmem, size = 0x1a000, scoped, tag = 'output window, operand 0']
    #allocation4 [shape = 's32[2]{0}', space=sflag, size = 0x8, scoped, tag = 'scoped memory for embed_branch.1']
    %8 = vsyncpa [#allocation4], 0
    %s9 = scalar_lea.sflag [#allocation4], 1
    %10 = vsyncpa %s9, 0
    loop: start=0, step=1, limit=4
    $region2: #{embed_branch.1} parent=1 // loop_pre_header
      _
    $region3: #{embed_branch.1} parent=1 // loop_header
      %s12 = sphi 0, %s16
      %p13 = scmp.ge.s32.totalorder %s12, 4
      %s19 = sphi 0, %s31
      %s20 = sphi 0, %s27
      %s21 = sphi 0, %s19
      %s22 = sphi 0, %s20
      %s23 = sphi 0, %s21
      %s24 = sphi 0, %s22
      %s36 = sphi 0, %s38
      %s39 = sphi 0, %s36
      %s40 = sphi 0, %s39
      %s56 = sphi 0, %s40
      %s62 = sphi 0, %s64
      %s65 = sphi 0, %s62
      %s66 = sphi 0, %s65
      %s82 = sphi 0, %s66
      %s86 = sphi 0, %s86
      %s88 = sphi 0, %s86
      %s89 = sphi 0, %s88
      %s103 = sphi 0, %s89
      %s109 = sphi 0, %s111
      %s112 = sphi 0, %s109
      %s113 = sphi 0, %s112
      %s129 = sphi 0, %s113
    $region4: #{embed_branch.1} parent=1 // loop_header_branch
      %15 = sbr.rel (%p13) target = $region8
    $region5: #{embed_branch.1} parent=1 // loop_body
      %s17 = ssub.s32 %s12, 1
      %s18 = ssub.s32 %s12, 2
      %s25 = sadd.s32 1, %s20
      %p26 = scmp.ge.s32.totalorder %s25, 1
      %s27 = scalar_select %p26, 0, %s25
      %s28 = sadd.s32 1, %s19
      %s29 = scalar_select %p26, %s28, %s19
      %p30 = scmp.ge.s32.totalorder %s29, 2
      %s31 = scalar_select %p30, 0, %s29
      %s32 = ssub.s32 %s19, %s31
      %s33 = ssub.s32 %s20, %s27
      %s34 = sor.u32 %s32, %s33
      %p35 = scmp.eq.s32.totalorder %s34, 0
      %s37 = sadd.s32 %s36, 1
      %s38 = scalar_select %p35, %s36, %s37
      %p41 = pneg %p35
      %p42 = scmp.eq.s32.totalorder %s12, 1
      %p43 = por %p41, %p42
      %p44 = scmp.ne.s32.totalorder %s36, %s39
      %p45 = scmp.eq.s32.totalorder %s12, 0
      %p46 = por %p44, %p45
      %p47 = scmp.ne.s32.totalorder %s36, %s39
      %p48 = scmp.eq.s32.totalorder %s17, 1
      %p49 = por %p47, %p48
      %p50 = scmp.ne.s32.totalorder %s39, %s40
      %p51 = scmp.eq.s32.totalorder %s17, 0
      %p52 = por %p50, %p51
      %p53 = scmp.ne.s32.totalorder %s39, %s40
      %p54 = scmp.eq.s32.totalorder %s18, 1
      %p55 = por %p53, %p54
      %p57 = scmp.ne.s32.totalorder %s40, %s56
      %p58 = scmp.eq.s32.totalorder %s18, 0
      %p59 = por %p57, %p58
      %s60 = ssub.s32 %s20, %s27
      %p61 = scmp.eq.s32.totalorder %s60, 0
      %s63 = sadd.s32 %s62, 1
      %s64 = scalar_select %p61, %s62, %s63
      %p67 = pneg %p61
      %p68 = scmp.eq.s32.totalorder %s12, 1
      %p69 = por %p67, %p68
      %p70 = scmp.ne.s32.totalorder %s62, %s65
      %p71 = scmp.eq.s32.totalorder %s12, 0
      %p72 = por %p70, %p71
      %p73 = scmp.ne.s32.totalorder %s62, %s65
      %p74 = scmp.eq.s32.totalorder %s17, 1
      %p75 = por %p73, %p74
      %p76 = scmp.ne.s32.totalorder %s65, %s66
      %p77 = scmp.eq.s32.totalorder %s17, 0
      %p78 = por %p76, %p77
      %p79 = scmp.ne.s32.totalorder %s65, %s66
      %p80 = scmp.eq.s32.totalorder %s18, 1
      %p81 = por %p79, %p80
      %p83 = scmp.ne.s32.totalorder %s66, %s82
      %p84 = scmp.eq.s32.totalorder %s18, 0
      %p85 = por %p83, %p84
      %s87 = sadd.s32 %s86, 1
      %p90 = scmp.eq.s32.totalorder %s12, 1
      %p91 = scmp.ne.s32.totalorder %s86, %s88
      %p92 = scmp.eq.s32.totalorder %s12, 0
      %p93 = por %p91, %p92
      %p94 = scmp.ne.s32.totalorder %s86, %s88
      %p95 = scmp.eq.s32.totalorder %s17, 1
      %p96 = por %p94, %p95
      %p97 = scmp.ne.s32.totalorder %s88, %s89
      %p98 = scmp.eq.s32.totalorder %s17, 0
      %p99 = por %p97, %p98
      %p100 = scmp.ne.s32.totalorder %s88, %s89
      %p101 = scmp.eq.s32.totalorder %s18, 1
      %p102 = por %p100, %p101
      %p104 = scmp.ne.s32.totalorder %s89, %s103
      %p105 = scmp.eq.s32.totalorder %s18, 0
      %p106 = por %p104, %p105
      %s107 = ssub.s32 %s19, %s31
      %p108 = scmp.eq.s32.totalorder %s107, 0
      %s110 = sadd.s32 %s109, 1
      %s111 = scalar_select %p108, %s109, %s110
      %p114 = pneg %p108
      %p115 = scmp.eq.s32.totalorder %s12, 1
      %p116 = por %p114, %p115
      %p117 = scmp.ne.s32.totalorder %s109, %s112
      %p118 = scmp.eq.s32.totalorder %s12, 0
      %p119 = por %p117, %p118
      %p120 = scmp.ne.s32.totalorder %s109, %s112
      %p121 = scmp.eq.s32.totalorder %s17, 1
      %p122 = por %p120, %p121
      %p123 = scmp.ne.s32.totalorder %s112, %s113
      %p124 = scmp.eq.s32.totalorder %s17, 0
      %p125 = por %p123, %p124
      %p126 = scmp.ne.s32.totalorder %s112, %s113
      %p127 = scmp.eq.s32.totalorder %s18, 1
      %p128 = por %p126, %p127
      %p130 = scmp.ne.s32.totalorder %s113, %s129
      %p131 = scmp.eq.s32.totalorder %s18, 0
      %p132 = por %p130, %p131
      %p133 = scmp.le.s32.totalorder 1, %s12
      %p134 = scmp.lt.s32.totalorder %s12, 3
      %p135 = pnand %p133, %p134
      %p136 = pneg %p135
      // Predicated region
      $region9: #{embed_branch.1} parent=5 // pred_check
        _
      $region10: #{embed_branch.1} parent=5 // pred_check_branch
        %138 = sbr.rel (%p135) target = $region12
      $region11: #{embed_branch.1} parent=5 // pred_region
        %s139 = ssub.s32 %s12, 1
        // Predicated region
        $region13: #{embed_branch.1} parent=11 // pred_check
          %p140 = pneg %p78
        $region14: #{embed_branch.1} parent=11 // pred_check_branch
          %142 = sbr.rel (%p140) target = $region16
        $region15: #{embed_branch.1} parent=11 // pred_region
          %s143 = smul.u32 4, %s22
          %p144 = scmp.lt.s32.totalorder %s143, 3
          %s145 = scalar_select %p144, %s143, 3
          %s146 = smul.addr %s145, 8
          %s147 = scalar_lea.vmem %s1, %s146
          %s148 = smul.u32 4, %s22
        $region16: #{embed_branch.1} parent=11 // pred_fallthru
          _
        // Predicated region
        $region17: #{embed_branch.1} parent=11 // pred_check
          %p149 = pneg %p99
        $region18: #{embed_branch.1} parent=11 // pred_check_branch
          %151 = sbr.rel (%p149) target = $region20
        $region19: #{embed_branch.1} parent=11 // pred_region
          _
        $region20: #{embed_branch.1} parent=11 // pred_fallthru
          _
      $region12: #{embed_branch.1} parent=5 // pred_fallthru
        _
      %p152 = scmp.lt.s32.totalorder %s12, 2
      // Predicated region
      $region21: #{embed_branch.1} parent=5 // pred_check
        %p153 = pneg %p152
      $region22: #{embed_branch.1} parent=5 // pred_check_branch
        %155 = sbr.rel (%p153) target = $region24
      $region23: #{embed_branch.1} parent=5 // pred_region
        // Predicated region
        $region25: #{embed_branch.1} parent=23 // pred_check
          %p156 = pneg %p46
        $region26: #{embed_branch.1} parent=23 // pred_check_branch
          %158 = sbr.rel (%p156) target = $region28
        $region27: #{embed_branch.1} parent=23 // pred_region
          %s159 = smul.u32 13, %s19
          %s160 = ssub.s32 25, %s159
          %p161 = scmp.lt.s32.totalorder %s160, 13
          %s162 = scalar_select %p161, %s160, 13
          %s163 = smul.u32 128, %s162
          %p164 = scmp.lt.s32.totalorder %s159, 24
          %s165 = scalar_select %p164, %s159, 24
          %p166 = scmp.lt.s32.totalorder %s20, 0
          %s167 = scalar_select %p166, %s20, 0
          %s168 = sadd.s32 %s167, %s165
          %s169 = smul.addr %s168, 8
          %s170 = scalar_lea.vmem %s0, %s169
          %s171 = smul.u32 13, %s19
          %s172 = ssub.s32 25, %s171
          %p173 = scmp.lt.s32.totalorder %s172, 13
          %s174 = scalar_select %p173, %s172, 13
          %s175 = smul.u32 128, %s174
        $region28: #{embed_branch.1} parent=23 // pred_fallthru
          _
      $region24: #{embed_branch.1} parent=5 // pred_fallthru
        _
      %p176 = scmp.le.s32.totalorder 1, %s12
      %p177 = scmp.lt.s32.totalorder %s12, 3
      %p178 = pnand %p176, %p177
      %p179 = pneg %p178
      // Predicated region
      $region29: #{embed_branch.1} parent=5 // pred_check
        _
      $region30: #{embed_branch.1} parent=5 // pred_check_branch
        %181 = sbr.rel (%p178) target = $region32
      $region31: #{embed_branch.1} parent=5 // pred_region
        %s182 = ssub.s32 %s12, 1
        %s183 = smul.u32 13, %s21
        %s184 = ssub.s32 25, %s183
        %p185 = scmp.lt.s32.totalorder %s184, 13
        %s186 = scalar_select %p185, %s184, 13
        %s187 = smul.u32 128, %s186
        %p188 = scmp.lt.s32.totalorder %s183, 24
        %s189 = scalar_select %p188, %s183, 24
        %p190 = scmp.lt.s32.totalorder %s22, 0
        %s191 = scalar_select %p190, %s22, 0
        %s192 = sadd.s32 %s191, %s189
        %s193 = smul.addr %s192, 8
        %s194 = scalar_lea.vmem %s0, %s193
        %p195 = pneg %p52
        %p196 = pneg %p49
        %s197 = smul.u32 4, %s22
        %p198 = scmp.lt.s32.totalorder %s197, 3
        %s199 = scalar_select %p198, %s197, 3
        %s200 = smul.addr %s199, 8
        %s201 = scalar_lea.vmem %s1, %s200
        %p202 = pneg %p78
        %p203 = pneg %p75
        %p204 = pneg %p99
        %p205 = pneg %p96
        %p206 = pneg %p125
        %p207 = pneg %p122
        %s208 = sand.u32 %s112, 1
        %s209 = scalar_lea.sflag [#allocation4], %s208
        %s210 = sand.u32 %s112, 1
        %s211 = smul.addr %s210, 104
        %s212 = scalar_lea.vmem [#allocation3], %s211
        %s213 = smul.u32 13, %s21
        %s214 = ssub.s32 25, %s213
        %p215 = scmp.lt.s32.totalorder %s214, 13
        %s216 = scalar_select %p215, %s214, 13
        %s217 = smul.u32 128, %s216
        %p218 = scmp.lt.s32.totalorder %s213, 24
        %s219 = scalar_select %p218, %s213, 24
        %p220 = scmp.lt.s32.totalorder %s22, 0
        %s221 = scalar_select %p220, %s22, 0
        %s222 = sadd.s32 %s221, %s219
        %s223 = smul.addr %s222, 8
        %s224 = scalar_lea.vmem %s0, %s223
        %s225 = smul.u32 13, %s21
        %s226 = ssub.s32 25, %s225
        %p227 = scmp.lt.s32.totalorder %s226, 13
        %s228 = scalar_select %p227, %s226, 13
        %s229 = smul.u32 128, %s228
        %s230 = smul.u32 4, %s22
        %p231 = scmp.lt.s32.totalorder %s230, 3
        %s232 = scalar_select %p231, %s230, 3
        %s233 = smul.addr %s232, 8
        %s234 = scalar_lea.vmem %s1, %s233
        %s235 = smul.u32 4, %s22
        %s236 = smul.u32 13, %s21
        %s237 = ssub.s32 25, %s236
        %p238 = scmp.lt.s32.totalorder %s237, 13
        %s239 = scalar_select %p238, %s237, 13
        %s240 = smul.u32 128, %s239
        %p241 = scmp.eq.s32.totalorder %s22, 0
        // Predicated region
        $region33: #{embed_branch.1} parent=31 // pred_check
          %p242 = pneg %p241
        $region34: #{embed_branch.1} parent=31 // pred_check_branch
          %244 = sbr.rel (%p242) target = $region36
        $region35: #{embed_branch.1} parent=31 // pred_region
          %245 = vst [vmem:[#allocation2] sm:$0xff] 0.0
          %246 = vst [vmem:[#allocation2 + $0x8] sm:$0xff] 0.0
          %247 = vst [vmem:[#allocation2 + $0x10] sm:$0xff] 0.0
          %248 = vst [vmem:[#allocation2 + $0x18] sm:$0xff] 0.0
          %249 = vst [vmem:[#allocation2 + $0x20] sm:$0xff] 0.0
          %250 = vst [vmem:[#allocation2 + $0x28] sm:$0xff] 0.0
          %251 = vst [vmem:[#allocation2 + $0x30] sm:$0xff] 0.0
          %252 = vst [vmem:[#allocation2 + $0x38] sm:$0xff] 0.0
          %253 = vst [vmem:[#allocation2 + $0x40] sm:$0xff] 0.0
          %254 = vst [vmem:[#allocation2 + $0x48] sm:$0xff] 0.0
          %255 = vst [vmem:[#allocation2 + $0x50] sm:$0xff] 0.0
          %256 = vst [vmem:[#allocation2 + $0x58] sm:$0xff] 0.0
          %257 = vst [vmem:[#allocation2 + $0x60] sm:$0xff] 0.0
        $region36: #{embed_branch.1} parent=31 // pred_fallthru
          _
        %v258 = vld [vmem:[#allocation2] sm:$0xff]
        %v259 = vld [vmem:[#allocation2 + $0x8] sm:$0xff]
        %v260 = vld [vmem:[#allocation2 + $0x10] sm:$0xff]
        %v261 = vld [vmem:[#allocation2 + $0x18] sm:$0xff]
        %v262 = vld [vmem:[#allocation2 + $0x20] sm:$0xff]
        %v263 = vld [vmem:[#allocation2 + $0x28] sm:$0xff]
        %v264 = vld [vmem:[#allocation2 + $0x30] sm:$0xff]
        %v265 = vld [vmem:[#allocation2 + $0x38] sm:$0xff]
        %v266 = vld [vmem:[#allocation2 + $0x40] sm:$0xff]
        %v267 = vld [vmem:[#allocation2 + $0x48] sm:$0xff]
        %v268 = vld [vmem:[#allocation2 + $0x50] sm:$0xff]
        %v269 = vld [vmem:[#allocation2 + $0x58] sm:$0xff]
        %v270 = vld [vmem:[#allocation2 + $0x60] sm:$0xff]
        %v271 = vld [vmem:[%s224] sm:$0xff]
        %v272 = vld [vmem:[%s224 + $0x8] sm:$0xff]
        %v273 = vld [vmem:[%s224 + $0x10] sm:$0xff]
        %v274 = vld [vmem:[%s224 + $0x18] sm:$0xff]
        %v275 = vld [vmem:[%s224 + $0x20] sm:$0xff]
        %v276 = vld [vmem:[%s224 + $0x28] sm:$0xff]
        %v277 = vld [vmem:[%s224 + $0x30] sm:$0xff]
        %v278 = vld [vmem:[%s224 + $0x38] sm:$0xff]
        %v279 = vld [vmem:[%s224 + $0x40] sm:$0xff]
        %v280 = vld [vmem:[%s224 + $0x48] sm:$0xff]
        %v281 = vld [vmem:[%s224 + $0x50] sm:$0xff]
        %v282 = vld [vmem:[%s224 + $0x58] sm:$0xff]
        %v283 = vld [vmem:[%s224 + $0x60] sm:$0xff]
        %v284 = vld [vmem:[%s234] sm:$0xff]
        %v285 = vld [vmem:[%s234 + $0x8] sm:$0xff]
        %v286 = vld [vmem:[%s234 + $0x10] sm:$0xff]
        %v287 = vld [vmem:[%s234 + $0x18] sm:$0xff]
        %vm288 = vcmask 261120
        %v290 = vsel %vm288, %v271, 0
        %v293 = vsel %vm288, %v272, 0
        %v296 = vsel %vm288, %v273, 0
        %v299 = vsel %vm288, %v274, 0
        %v302 = vsel %vm288, %v275, 0
        %v305 = vsel %vm288, %v276, 0
        %v308 = vsel %vm288, %v277, 0
        %v311 = vsel %vm288, %v278, 0
        %v314 = vsel %vm288, %v279, 0
        %v317 = vsel %vm288, %v280, 0
        %v320 = vsel %vm288, %v281, 0
        %v323 = vsel %vm288, %v282, 0
        %v326 = vsel %vm288, %v283, 0
        %328 = vmatprep.subr.mxu0 0.0
        %329 = vmatpush1.msra.mxu0 %v284
        %330 = vmatprep.subr.mxu0 0.0
        %331 = vmatpush1.msra.mxu0 %v285
        %332 = vmatprep.subr.mxu0 0.0
        %333 = vmatpush1.msra.mxu0 %v286
        %334 = vmatprep.subr.mxu0 0.0
        %335 = vmatpush1.msra.mxu0 %v287
        %336 = vmatprep.subr.mxu0 0.0
        %337 = vmatpush1.msra.mxu0 0.0
        %338 = vmatprep.subr.mxu0 0.0
        %339 = vmatpush1.msra.mxu0 0.0
        %340 = vmatprep.subr.mxu0 0.0
        %341 = vmatpush1.msra.mxu0 0.0
        %342 = vmatprep.subr.mxu0 0.0
        %343 = vmatpush1.msra.mxu0 0.0
        %344 = vmatprep.subr.mxu0 0.0
        %345 = vmatpush1.msra.mxu0 0.0
        %346 = vmatprep.subr.mxu0 0.0
        %347 = vmatpush1.msra.mxu0 0.0
        %348 = vmatprep.subr.mxu0 0.0
        %349 = vmatpush1.msra.mxu0 0.0
        %350 = vmatprep.subr.mxu0 0.0
        %351 = vmatpush1.msra.mxu0 0.0
        %352 = vmatprep.subr.mxu0 0.0
        %353 = vmatpush1.msra.mxu0 0.0
        %354 = vmatprep.subr.mxu0 0.0
        %355 = vmatpush1.msra.mxu0 0.0
        %356 = vmatprep.subr.mxu0 0.0
        %357 = vmatpush1.msra.mxu0 0.0
        %358 = vmatprep.subr.mxu0 0.0
        %359 = vmatpush1.msra.mxu0 0.0
        %360 = vmatprep.subr.mxu0 0.0
        %361 = vmatpush1.msra.mxu0 0.0
        %362 = vmatprep.subr.mxu0 0.0
        %363 = vmatpush1.msra.mxu0 0.0
        %364 = vmatprep.subr.mxu0 0.0
        %365 = vmatpush1.msra.mxu0 0.0
        %366 = vmatprep.subr.mxu0 0.0
        %367 = vmatpush1.msra.mxu0 0.0
        %368 = vmatprep.subr.mxu0 0.0
        %369 = vmatpush1.msra.mxu0 0.0
        %370 = vmatprep.subr.mxu0 0.0
        %371 = vmatpush1.msra.mxu0 0.0
        %372 = vmatprep.subr.mxu0 0.0
        %373 = vmatpush1.msra.mxu0 0.0
        %374 = vmatprep.subr.mxu0 0.0
        %375 = vmatpush1.msra.mxu0 0.0
        %376 = vmatprep.subr.mxu0 0.0
        %377 = vmatpush1.msra.mxu0 0.0
        %378 = vmatprep.subr.mxu0 0.0
        %379 = vmatpush1.msra.mxu0 0.0
        %380 = vmatprep.subr.mxu0 0.0
        %381 = vmatpush1.msra.mxu0 0.0
        %382 = vmatprep.subr.mxu0 0.0
        %383 = vmatpush1.msra.mxu0 0.0
        %384 = vmatprep.subr.mxu0 0.0
        %385 = vmatpush1.msra.mxu0 0.0
        %386 = vmatprep.subr.mxu0 0.0
        %387 = vmatpush1.msra.mxu0 0.0
        %388 = vmatprep.subr.mxu0 0.0
        %389 = vmatpush1.msra.mxu0 0.0
        %390 = vmatprep.subr.mxu0 0.0
        %391 = vmatpush1.msra.mxu0 0.0
        %392 = vmatprep.mubr.f32.mxu0 0.0
        %393 = vmatmul.mubr.f32.gmra.mrb[0].mxu0 %v290
        %v394 = vpop.f32.mrb[0].mxu0
        %v395 = vadd.f32 0.0, %v394
        %v396 = vpop.f32.mrb[0].mxu0
        %397 = vmatprep.mubr.f32.mxu0 0.0
        %398 = vmatmul.mubr.f32.gmra.mrb[0].mxu0 %v293
        %v399 = vpop.f32.mrb[0].mxu0
        %v400 = vadd.f32 0.0, %v399
        %v401 = vpop.f32.mrb[0].mxu0
        %402 = vmatprep.mubr.f32.mxu0 0.0
        %403 = vmatmul.mubr.f32.gmra.mrb[0].mxu0 %v296
        %v404 = vpop.f32.mrb[0].mxu0
        %v405 = vadd.f32 0.0, %v404
        %v406 = vpop.f32.mrb[0].mxu0
        %407 = vmatprep.mubr.f32.mxu0 0.0
        %408 = vmatmul.mubr.f32.gmra.mrb[0].mxu0 %v299
        %v409 = vpop.f32.mrb[0].mxu0
        %v410 = vadd.f32 0.0, %v409
        %v411 = vpop.f32.mrb[0].mxu0
        %412 = vmatprep.mubr.f32.mxu0 0.0
        %413 = vmatmul.mubr.f32.gmra.mrb[0].mxu0 %v302
        %v414 = vpop.f32.mrb[0].mxu0
        %v415 = vadd.f32 0.0, %v414
        %v416 = vpop.f32.mrb[0].mxu0
        %417 = vmatprep.mubr.f32.mxu0 0.0
        %418 = vmatmul.mubr.f32.gmra.mrb[0].mxu0 %v305
        %v419 = vpop.f32.mrb[0].mxu0
        %v420 = vadd.f32 0.0, %v419
        %v421 = vpop.f32.mrb[0].mxu0
        %422 = vmatprep.mubr.f32.mxu0 0.0
        %423 = vmatmul.mubr.f32.gmra.mrb[0].mxu0 %v308
        %v424 = vpop.f32.mrb[0].mxu0
        %v425 = vadd.f32 0.0, %v424
        %v426 = vpop.f32.mrb[0].mxu0
        %427 = vmatprep.mubr.f32.mxu0 0.0
        %428 = vmatmul.mubr.f32.gmra.mrb[0].mxu0 %v311
        %v429 = vpop.f32.mrb[0].mxu0
        %v430 = vadd.f32 0.0, %v429
        %v431 = vpop.f32.mrb[0].mxu0
        %432 = vmatprep.mubr.f32.mxu0 0.0
        %433 = vmatmul.mubr.f32.gmra.mrb[0].mxu0 %v314
        %v434 = vpop.f32.mrb[0].mxu0
        %v435 = vadd.f32 0.0, %v434
        %v436 = vpop.f32.mrb[0].mxu0
        %437 = vmatprep.mubr.f32.mxu0 0.0
        %438 = vmatmul.mubr.f32.gmra.mrb[0].mxu0 %v317
        %v439 = vpop.f32.mrb[0].mxu0
        %v440 = vadd.f32 0.0, %v439
        %v441 = vpop.f32.mrb[0].mxu0
        %442 = vmatprep.mubr.f32.mxu0 0.0
        %443 = vmatmul.mubr.f32.gmra.mrb[0].mxu0 %v320
        %v444 = vpop.f32.mrb[0].mxu0
        %v445 = vadd.f32 0.0, %v444
        %v446 = vpop.f32.mrb[0].mxu0
        %447 = vmatprep.mubr.f32.mxu0 0.0
        %448 = vmatmul.mubr.f32.gmra.mrb[0].mxu0 %v323
        %v449 = vpop.f32.mrb[0].mxu0
        %v450 = vadd.f32 0.0, %v449
        %v451 = vpop.f32.mrb[0].mxu0
        %452 = vmatprep.mubr.f32.mxu0 0.0
        %453 = vmatmul.mubr.f32.gmra.mrb[0].mxu0 %v326
        %v454 = vpop.f32.mrb[0].mxu0
        %v455 = vadd.f32 0.0, %v454
        %v456 = vpop.f32.mrb[0].mxu0
        %457 = vdwg.mxu0
        %v458 = vadd.f32 %v258, %v395
        %v459 = vadd.f32 %v259, %v400
        %v460 = vadd.f32 %v260, %v405
        %v461 = vadd.f32 %v261, %v410
        %v462 = vadd.f32 %v262, %v415
        %v463 = vadd.f32 %v263, %v420
        %v464 = vadd.f32 %v264, %v425
        %v465 = vadd.f32 %v265, %v430
        %v466 = vadd.f32 %v266, %v435
        %v467 = vadd.f32 %v267, %v440
        %v468 = vadd.f32 %v268, %v445
        %v469 = vadd.f32 %v269, %v450
        %v470 = vadd.f32 %v270, %v455
        %471 = vst [vmem:[#allocation2] sm:$0xff] %v458
        %472 = vst [vmem:[#allocation2 + $0x8] sm:$0xff] %v459
        %473 = vst [vmem:[#allocation2 + $0x10] sm:$0xff] %v460
        %474 = vst [vmem:[#allocation2 + $0x18] sm:$0xff] %v461
        %475 = vst [vmem:[#allocation2 + $0x20] sm:$0xff] %v462
        %476 = vst [vmem:[#allocation2 + $0x28] sm:$0xff] %v463
        %477 = vst [vmem:[#allocation2 + $0x30] sm:$0xff] %v464
        %478 = vst [vmem:[#allocation2 + $0x38] sm:$0xff] %v465
        %479 = vst [vmem:[#allocation2 + $0x40] sm:$0xff] %v466
        %480 = vst [vmem:[#allocation2 + $0x48] sm:$0xff] %v467
        %481 = vst [vmem:[#allocation2 + $0x50] sm:$0xff] %v468
        %482 = vst [vmem:[#allocation2 + $0x58] sm:$0xff] %v469
        %483 = vst [vmem:[#allocation2 + $0x60] sm:$0xff] %v470
        // Predicated region
        $region37: #{embed_branch.1} parent=31 // pred_check
          %p484 = pneg %p241
        $region38: #{embed_branch.1} parent=31 // pred_check_branch
          %486 = sbr.rel (%p484) target = $region40
        $region39: #{embed_branch.1} parent=31 // pred_region
          %v487 = vld [vmem:[#allocation2] sm:$0xff]
          %v488 = vld [vmem:[#allocation2 + $0x8] sm:$0xff]
          %v489 = vld [vmem:[#allocation2 + $0x10] sm:$0xff]
          %v490 = vld [vmem:[#allocation2 + $0x18] sm:$0xff]
          %v491 = vld [vmem:[#allocation2 + $0x20] sm:$0xff]
          %v492 = vld [vmem:[#allocation2 + $0x28] sm:$0xff]
          %v493 = vld [vmem:[#allocation2 + $0x30] sm:$0xff]
          %v494 = vld [vmem:[#allocation2 + $0x38] sm:$0xff]
          %v495 = vld [vmem:[#allocation2 + $0x40] sm:$0xff]
          %v496 = vld [vmem:[#allocation2 + $0x48] sm:$0xff]
          %v497 = vld [vmem:[#allocation2 + $0x50] sm:$0xff]
          %v498 = vld [vmem:[#allocation2 + $0x58] sm:$0xff]
          %v499 = vld [vmem:[#allocation2 + $0x60] sm:$0xff]
          %v500 = vld [vmem:[%s2] sm:$0x1]
          %v502 = vlaneseq
          %v503 = vshrl.u32 %v502, 7
          %v504 = vsub.s32 0, %v503
          %v505 = vrot.slane %v500, %v504
          %v507 = vadd.f32 %v487, %v505
          %v508 = vadd.f32 %v488, %v505
          %v509 = vadd.f32 %v489, %v505
          %v510 = vadd.f32 %v490, %v505
          %v511 = vadd.f32 %v491, %v505
          %v512 = vadd.f32 %v492, %v505
          %v513 = vadd.f32 %v493, %v505
          %v514 = vadd.f32 %v494, %v505
          %v515 = vadd.f32 %v495, %v505
          %v516 = vadd.f32 %v496, %v505
          %v517 = vadd.f32 %v497, %v505
          %v518 = vadd.f32 %v498, %v505
          %v519 = vadd.f32 %v499, %v505
          %v520 = vmax.f32 %v507, 0.0
          %v521 = vmax.f32 %v508, 0.0
          %v522 = vmax.f32 %v509, 0.0
          %v523 = vmax.f32 %v510, 0.0
          %v524 = vmax.f32 %v511, 0.0
          %v525 = vmax.f32 %v512, 0.0
          %v526 = vmax.f32 %v513, 0.0
          %v527 = vmax.f32 %v514, 0.0
          %v528 = vmax.f32 %v515, 0.0
          %v529 = vmax.f32 %v516, 0.0
          %v530 = vmax.f32 %v517, 0.0
          %v531 = vmax.f32 %v518, 0.0
          %v532 = vmax.f32 %v519, 0.0
          %v533 = vmul.f32 %v520, %v520
          %v534 = vmul.f32 %v521, %v521
          %v535 = vmul.f32 %v522, %v522
          %v536 = vmul.f32 %v523, %v523
          %v537 = vmul.f32 %v524, %v524
          %v538 = vmul.f32 %v525, %v525
          %v539 = vmul.f32 %v526, %v526
          %v540 = vmul.f32 %v527, %v527
          %v541 = vmul.f32 %v528, %v528
          %v542 = vmul.f32 %v529, %v529
          %v543 = vmul.f32 %v530, %v530
          %v544 = vmul.f32 %v531, %v531
          %v545 = vmul.f32 %v532, %v532
          %546 = vadd.xlane.f32.xlu0 %v533
          %v547 = vpop.xlane.xlu0 %546
          %548 = vadd.xlane.f32.xlu0 %v534
          %v549 = vpop.xlane.xlu0 %548
          %550 = vadd.xlane.f32.xlu0 %v535
          %v551 = vpop.xlane.xlu0 %550
          %552 = vadd.xlane.f32.xlu0 %v536
          %v553 = vpop.xlane.xlu0 %552
          %554 = vadd.xlane.f32.xlu0 %v537
          %v555 = vpop.xlane.xlu0 %554
          %556 = vadd.xlane.f32.xlu0 %v538
          %v557 = vpop.xlane.xlu0 %556
          %558 = vadd.xlane.f32.xlu0 %v539
          %v559 = vpop.xlane.xlu0 %558
          %560 = vadd.xlane.f32.xlu0 %v540
          %v561 = vpop.xlane.xlu0 %560
          %562 = vadd.xlane.f32.xlu0 %v541
          %v563 = vpop.xlane.xlu0 %562
          %564 = vadd.xlane.f32.xlu0 %v542
          %v565 = vpop.xlane.xlu0 %564
          %566 = vadd.xlane.f32.xlu0 %v543
          %v567 = vpop.xlane.xlu0 %566
          %568 = vadd.xlane.f32.xlu0 %v544
          %v569 = vpop.xlane.xlu0 %568
          %570 = vadd.xlane.f32.xlu0 %v545
          %v571 = vpop.xlane.xlu0 %570
          %v572 = vmax.f32 %v547, 1e-24
          %v573 = vmax.f32 %v549, 1e-24
          %v574 = vmax.f32 %v551, 1e-24
          %v575 = vmax.f32 %v553, 1e-24
          %v576 = vmax.f32 %v555, 1e-24
          %v577 = vmax.f32 %v557, 1e-24
          %v578 = vmax.f32 %v559, 1e-24
          %v579 = vmax.f32 %v561, 1e-24
          %v580 = vmax.f32 %v563, 1e-24
          %v581 = vmax.f32 %v565, 1e-24
          %v582 = vmax.f32 %v567, 1e-24
          %v583 = vmax.f32 %v569, 1e-24
          %v584 = vmax.f32 %v571, 1e-24
          %v585 = vrsqrt.pop %v572
          %v586 = vrsqrt.pop %v573
          %v587 = vrsqrt.pop %v574
          %v588 = vrsqrt.pop %v575
          %v589 = vrsqrt.pop %v576
          %v590 = vrsqrt.pop %v577
          %v591 = vrsqrt.pop %v578
          %v592 = vrsqrt.pop %v579
          %v593 = vrsqrt.pop %v580
          %v594 = vrsqrt.pop %v581
          %v595 = vrsqrt.pop %v582
          %v596 = vrsqrt.pop %v583
          %v597 = vrsqrt.pop %v584
          %v598 = vmul.f32 %v520, %v585
          %v599 = vmul.f32 %v521, %v586
          %v600 = vmul.f32 %v522, %v587
          %v601 = vmul.f32 %v523, %v588
          %v602 = vmul.f32 %v524, %v589
          %v603 = vmul.f32 %v525, %v590
          %v604 = vmul.f32 %v526, %v591
          %v605 = vmul.f32 %v527, %v592
          %v606 = vmul.f32 %v528, %v593
          %v607 = vmul.f32 %v529, %v594
          %v608 = vmul.f32 %v530, %v595
          %v609 = vmul.f32 %v531, %v596
          %v610 = vmul.f32 %v532, %v597
          %611 = vst [vmem:[%s212] sm:$0xff] %v598
          %612 = vst [vmem:[%s212 + $0x8] sm:$0xff] %v599
          %613 = vst [vmem:[%s212 + $0x10] sm:$0xff] %v600
          %614 = vst [vmem:[%s212 + $0x18] sm:$0xff] %v601
          %615 = vst [vmem:[%s212 + $0x20] sm:$0xff] %v602
          %616 = vst [vmem:[%s212 + $0x28] sm:$0xff] %v603
          %617 = vst [vmem:[%s212 + $0x30] sm:$0xff] %v604
          %618 = vst [vmem:[%s212 + $0x38] sm:$0xff] %v605
          %619 = vst [vmem:[%s212 + $0x40] sm:$0xff] %v606
          %620 = vst [vmem:[%s212 + $0x48] sm:$0xff] %v607
          %621 = vst [vmem:[%s212 + $0x50] sm:$0xff] %v608
          %622 = vst [vmem:[%s212 + $0x58] sm:$0xff] %v609
          %623 = vst [vmem:[%s212 + $0x60] sm:$0xff] %v610
        $region40: #{embed_branch.1} parent=31 // pred_fallthru
          _
        %s624 = sand.u32 %s112, 1
        %s625 = scalar_lea.sflag [#allocation4], %s624
        %s626 = sand.u32 %s112, 1
        %s627 = smul.addr %s626, 104
        %s628 = scalar_lea.vmem [#allocation3], %s627
        // Predicated region
        $region41: #{embed_branch.1} parent=31 // pred_check
          %p629 = pneg %p122
        $region42: #{embed_branch.1} parent=31 // pred_check_branch
          %631 = sbr.rel (%p629) target = $region44
        $region43: #{embed_branch.1} parent=31 // pred_region
          %s632 = smul.u32 13, %s21
          %s633 = ssub.s32 25, %s632
          %p634 = scmp.lt.s32.totalorder %s633, 13
          %s635 = scalar_select %p634, %s633, 13
          %s636 = smul.u32 128, %s635
          %s638 = ssub.s32 1664, %s636
          %639 = vsyncadd %s625, %s638
          %p640 = scmp.ne.s32.totalorder 0, %s636
          %s641 = smul.addr %s632, 128
          %s642 = scalar_lea.hbm %s3, %s641
          %s643 = smul.u32 8, %s635
          %s644 = sshll.u32 %s628, 4
          %s645 = int_to_ptr.vmem [resolvable:$true] %s644
          %s646 = sshll.u32 %s643, 4
          %650 = dma.vmem_to_hbm [thread:$0]  (%p640), %s645, %s646, %s642, %s625, 128, 128, 8
        $region44: #{embed_branch.1} parent=31 // pred_fallthru
          _
      $region32: #{embed_branch.1} parent=5 // pred_fallthru
        _
      %p651 = scmp.le.s32.totalorder 2, %s12
      // Predicated region
      $region45: #{embed_branch.1} parent=5 // pred_check
        %p652 = pneg %p651
      $region46: #{embed_branch.1} parent=5 // pred_check_branch
        %654 = sbr.rel (%p652) target = $region48
      $region47: #{embed_branch.1} parent=5 // pred_region
        %s655 = ssub.s32 %s12, 2
        // Predicated region
        $region49: #{embed_branch.1} parent=47 // pred_check
          %p656 = pneg %p128
        $region50: #{embed_branch.1} parent=47 // pred_check_branch
          %658 = sbr.rel (%p656) target = $region52
        $region51: #{embed_branch.1} parent=47 // pred_region
          %s659 = sand.u32 %s113, 1
          %s660 = scalar_lea.sflag [#allocation4], %s659
          %s661 = sand.u32 %s113, 1
          %s662 = smul.addr %s661, 104
          %s663 = scalar_lea.vmem [#allocation3], %s662
          %664 = dma.done %s660, 1664
        $region52: #{embed_branch.1} parent=47 // pred_fallthru
          _
      $region48: #{embed_branch.1} parent=5 // pred_fallthru
        _
    $region6: #{embed_branch.1} parent=1 // loop_footer
      %s16 = sadd.s32 1, %s12
    $region7: #{embed_branch.1} parent=1 // loop_footer_branch
      %11 = sbr.rel target = $region3
    $region8: #{embed_branch.1} parent=1 // loop_exit
      _
    %665 = vsyncpa [#allocation4], 1
    %s666 = scalar_lea.sflag [#allocation4], 1
    %667 = vsyncpa %s666, 1

</llo_original>
